<compile_context>
chip_gen: v7x
topology: tpu7x:2x2x1
jax: 0.10.0
libtpu: 0.0.40
codegen_flags: <defaults>
</compile_context>

<pallas_src>
import jax
import jax.numpy as jnp
from jax.experimental import pallas as pl
from jax.experimental.pallas import tpu as pltpu


def _round_up(x, m):
    return ((x + m - 1) // m) * m


def lstm_cell_kernel(x_ref, h_ref, c_ref, wx_ref, wh_ref, b_ref,
                     h_out_ref, c_out_ref):
    H = c_ref.shape[-1]

    # Two MXU pushes accumulating into one f32 pre-activation.  x/h are
    # downcast to bf16 on the VPU here (cheap) instead of in the wrapper.
    xb = x_ref[...].astype(jnp.bfloat16)
    hb = h_ref[...].astype(jnp.bfloat16)
    z = jnp.dot(xb, wx_ref[...], preferred_element_type=jnp.float32)
    z = z + jnp.dot(hb, wh_ref[...], preferred_element_type=jnp.float32)
    z = z + b_ref[...]

    # prepare_params folded the 0.5 sigmoid pre-scale into the i/f/o columns
    # of W and b, so a single full-width tanh plus a per-gate affine gives
    # sigmoid on [i|f|o] and tanh on [g]:  sigmoid(u) = 0.5*tanh(0.5*u) + 0.5.
    t = jnp.tanh(z)                                    # one (tile_b, 4H) EUP push
    col = jax.lax.broadcasted_iota(jnp.int32, (1, 4 * H), 1)
    is_sig = col < 3 * H
    gates = t * jnp.where(is_sig, 0.5, 1.0) + jnp.where(is_sig, 0.5, 0.0)

    it = gates[:, 0 * H:1 * H]
    ft = gates[:, 1 * H:2 * H]
    ot = gates[:, 2 * H:3 * H]
    gt = gates[:, 3 * H:4 * H]

    c = c_ref[...].astype(jnp.float32)                 # f32 cell state
    c_next = ft * c + it * gt
    h_next = ot * jnp.tanh(c_next)

    # Direct stores; no in-kernel concat / XLU lane shift.
    h_out_ref[...] = h_next.astype(h_out_ref.dtype)
    c_out_ref[...] = c_next.astype(c_out_ref.dtype)


def _choose_tile_b(B):
    # Multiple of 16 (bf16 sublane packing).  For B > 16, aim for >= 2 grid
    # steps so the "parallel" axis can shard across v7x's two TensorCores.
    if B <= 16:
        return B                      # single full-batch tile, no padding
    return min(256, _round_up((B + 1) // 2, 16))


@jax.jit
def vanilla_lstm_cell(x, h, c, wx_p, wh_p, b_p):
    """One LSTM-cell step.

    x: (B, In) f32, h/c: (B, H) f32,
    wx_p: (In, 4H) bf16, wh_p: (H, 4H) bf16, b_p: (1, 4H) f32
    (wx_p/wh_p/b_p must come from prepare_params).
    """
    B, H = h.shape
    In = x.shape[-1]
    in_dtype = h.dtype

    tile_b = _choose_tile_b(B)
    Bp = _round_up(B, tile_b)
    if Bp != B:
        pad = Bp - B
        x = jnp.pad(x, ((0, pad), (0, 0)))
        h = jnp.pad(h, ((0, pad), (0, 0)))
        c = jnp.pad(c, ((0, pad), (0, 0)))

    grid = (Bp // tile_b,)

    # VMEM budget: single-buffered resident weights/bias + double-buffered
    # activation/output tiles + headroom for the f32 z / gates intermediates.
    resident = wx_p.size * 2 + wh_p.size * 2 + b_p.size * 4
    per_step = 2 * (tile_b * In * 4 + 2 * tile_b * H * 4      # x, h, c inputs
                    + tile_b * H * 2 + tile_b * H * 4)        # h (bf16), c outputs
    z_scratch = 2 * tile_b * 4 * H * 4
    vmem_limit = int(min(64 * 2 ** 20,
                         max(32 * 2 ** 20,
                             2 * (resident + per_step + z_scratch))))

    h_next, c_next = pl.pallas_call(
        lstm_cell_kernel,
        out_shape=(jax.ShapeDtypeStruct((Bp, H), jnp.bfloat16),
                   jax.ShapeDtypeStruct((Bp, H), jnp.float32)),
        grid_spec=pltpu.PrefetchScalarGridSpec(
            num_scalar_prefetch=0,
            grid=grid,
            in_specs=[
                pl.BlockSpec((tile_b, In), lambda i: (i, 0)),    # x tile
                pl.BlockSpec((tile_b, H), lambda i: (i, 0)),     # h tile
                pl.BlockSpec((tile_b, H), lambda i: (i, 0)),     # c tile
                pl.BlockSpec((In, 4 * H), lambda i: (0, 0),      # Wx (resident)
                             pipeline_mode=pl.Buffered(1)),
                pl.BlockSpec((H, 4 * H), lambda i: (0, 0),       # Wh (resident)
                             pipeline_mode=pl.Buffered(1)),
                pl.BlockSpec((1, 4 * H), lambda i: (0, 0),       # bias (resident)
                             pipeline_mode=pl.Buffered(1)),
            ],
            out_specs=(
                pl.BlockSpec((tile_b, H), lambda i: (i, 0)),     # h_next (bf16)
                pl.BlockSpec((tile_b, H), lambda i: (i, 0)),     # c_next (f32)
            ),
        ),
        compiler_params=pltpu.CompilerParams(
            dimension_semantics=("parallel",),
            vmem_limit_bytes=vmem_limit),
    )(x, h, c, wx_p, wh_p, b_p)

    return h_next[:B].astype(in_dtype), c_next[:B].astype(in_dtype)


def _xavier_uniform(key, out_features, in_features):
    # Matches torch.nn.init.xavier_uniform_ on a (out, in) weight.
    bound = (6.0 / (in_features + out_features)) ** 0.5
    return jax.random.uniform(key, (out_features, in_features),
                              dtype=jnp.float32, minval=-bound, maxval=bound)


def make_params(key, input_size, hidden_size):
    keys = jax.random.split(key, 8)
    # Gate order [i, f, o, g]; x-weights and h-weights separately, matching the
    # torch module's eight nn.Linear layers (weight is (out, in); x @ W.T).
    wx_list = [_xavier_uniform(keys[i], hidden_size, input_size) for i in range(4)]
    wh_list = [_xavier_uniform(keys[4 + i], hidden_size, hidden_size) for i in range(4)]
    wx = jnp.concatenate([w.T for w in wx_list], axis=1)      # (In, 4H)
    wh = jnp.concatenate([w.T for w in wh_list], axis=1)      # (H, 4H)
    b = jnp.zeros((1, 4 * hidden_size), jnp.float32)          # biases init to zero
    return wx, wh, b


def prepare_params(wx, wh, b):
    """One-time parameter prep (outside the per-step call): fold the 0.5
    sigmoid pre-scale into the i/f/o gate columns and cast weights to bf16."""
    H = b.shape[-1] // 4
    col_scale = jnp.concatenate(
        [jnp.full((3 * H,), 0.5, jnp.float32), jnp.ones((H,), jnp.float32)])
    return ((wx * col_scale).astype(jnp.bfloat16),
            (wh * col_scale).astype(jnp.bfloat16),
            (b * col_scale).astype(jnp.float32))


def reference(x, h, c, wx, wh, b):
    z = x @ wx + h @ wh + b
    H = h.shape[-1]
    it = jax.nn.sigmoid(z[:, 0 * H:1 * H])
    ft = jax.nn.sigmoid(z[:, 1 * H:2 * H])
    ot = jax.nn.sigmoid(z[:, 2 * H:3 * H])
    gt = jnp.tanh(z[:, 3 * H:4 * H])
    c_next = ft * c + it * gt
    h_next = ot * jnp.tanh(c_next)
    return h_next, c_next


if __name__ == "__main__":
    B, INPUT_SIZE, HIDDEN_SIZE = 8, 16, 32

    key = jax.random.PRNGKey(0)
    kx, kh, kc, kp = jax.random.split(key, 4)

    x = jax.random.normal(kx, (B, INPUT_SIZE), jnp.float32)
    h = jax.random.normal(kh, (B, HIDDEN_SIZE), jnp.float32)
    c = jax.random.normal(kc, (B, HIDDEN_SIZE), jnp.float32)

    wx, wh, b = make_params(kp, INPUT_SIZE, HIDDEN_SIZE)
    wx_p, wh_p, b_p = prepare_params(wx, wh, b)

    h_next, c_next = jax.block_until_ready(
        vanilla_lstm_cell(x, h, c, wx_p, wh_p, b_p))

    # Loose tolerance: bf16 MXU operands / bf16-stored h; accumulation, gate
    # math and the cell state stay in f32, reference is full f32.
    h_ref, c_ref = reference(x, h, c, wx, wh, b)
    assert jnp.allclose(h_next, h_ref, atol=5e-2, rtol=5e-2), \
        float(jnp.max(jnp.abs(h_next - h_ref)))
    assert jnp.allclose(c_next, c_ref, atol=5e-2, rtol=5e-2), \
        float(jnp.max(jnp.abs(c_next - c_ref)))

    print("KERNEL_OK")
</pallas_src>

<mosaic_0001>
module attributes {stable_mosaic.version = 11 : i64} {
  func.func @lstm_cell_kernel(%arg0: i32, %arg1: memref<8x16xf32, #tpu.memory_space<vmem>>, %arg2: memref<8x32xf32, #tpu.memory_space<vmem>>, %arg3: memref<8x32xf32, #tpu.memory_space<vmem>>, %arg4: memref<16x128xbf16, #tpu.memory_space<vmem>>, %arg5: memref<32x128xbf16, #tpu.memory_space<vmem>>, %arg6: memref<1x128xf32, #tpu.memory_space<vmem>>, %arg7: memref<8x32xbf16, #tpu.memory_space<vmem>>, %arg8: memref<8x32xf32, #tpu.memory_space<vmem>>) attributes {dimension_semantics = [#tpu.dimension_semantics<parallel>], iteration_bounds = array<i64: 1>, scalar_prefetch = 0 : i64, scratch_operands = 0 : i64, tpu.core_type = #tpu.core_type<tc>, window_params = [{transform_indices = @transform_0, window_bounds = array<i64: 8, 16>}, {transform_indices = @transform_1, window_bounds = array<i64: 8, 32>}, {transform_indices = @transform_2, window_bounds = array<i64: 8, 32>}, {pipeline_mode = #tpu.pipeline_mode<synchronous>, transform_indices = @transform_3, window_bounds = array<i64: 16, 128>}, {pipeline_mode = #tpu.pipeline_mode<synchronous>, transform_indices = @transform_4, window_bounds = array<i64: 32, 128>}, {pipeline_mode = #tpu.pipeline_mode<synchronous>, transform_indices = @transform_5, window_bounds = array<i64: 1, 128>}, {transform_indices = @transform_6, window_bounds = array<i64: 8, 32>}, {transform_indices = @transform_7, window_bounds = array<i64: 8, 32>}]} {
    %c0 = arith.constant 0 : index
    %c0_0 = arith.constant 0 : index
    %0 = vector.load %arg1[%c0, %c0_0] : memref<8x16xf32, #tpu.memory_space<vmem>>, vector<8x16xf32>
    %1 = arith.truncf %0 : vector<8x16xf32> to vector<8x16xbf16>
    %c0_1 = arith.constant 0 : index
    %c0_2 = arith.constant 0 : index
    %2 = vector.load %arg2[%c0_1, %c0_2] : memref<8x32xf32, #tpu.memory_space<vmem>>, vector<8x32xf32>
    %3 = arith.truncf %2 : vector<8x32xf32> to vector<8x32xbf16>
    %c0_3 = arith.constant 0 : index
    %c0_4 = arith.constant 0 : index
    %4 = vector.load %arg4[%c0_3, %c0_4] : memref<16x128xbf16, #tpu.memory_space<vmem>>, vector<16x128xbf16>
    %cst = arith.constant dense<0.000000e+00> : vector<8x128xf32>
    %5 = tpu.matmul %1, %4, %cst {dimension_numbers = #tpu.dot_dimension_numbers<[1], [0], [0], [1], [0, 0, 1, 1], [], []>} : vector<8x16xbf16>, vector<16x128xbf16>, vector<8x128xf32> -> vector<8x128xf32>
    %c0_5 = arith.constant 0 : index
    %c0_6 = arith.constant 0 : index
    %6 = vector.load %arg5[%c0_5, %c0_6] : memref<32x128xbf16, #tpu.memory_space<vmem>>, vector<32x128xbf16>
    %cst_7 = arith.constant dense<0.000000e+00> : vector<8x128xf32>
    %7 = tpu.matmul %3, %6, %cst_7 {dimension_numbers = #tpu.dot_dimension_numbers<[1], [0], [0], [1], [0, 0, 1, 1], [], []>} : vector<8x32xbf16>, vector<32x128xbf16>, vector<8x128xf32> -> vector<8x128xf32>
    %8 = arith.addf %5, %7 : vector<8x128xf32>
    %c0_8 = arith.constant 0 : index
    %c0_9 = arith.constant 0 : index
    %9 = vector.load %arg6[%c0_8, %c0_9] : memref<1x128xf32, #tpu.memory_space<vmem>>, vector<1x128xf32>
    %10 = vector.broadcast %9 : vector<1x128xf32> to vector<8x128xf32>
    %11 = arith.addf %8, %10 : vector<8x128xf32>
    %12 = math.tanh %11 : vector<8x128xf32>
    %13 = tpu.iota {dimensions = array<i32: 1>} : vector<1x128xi32>
    %c96_i32 = arith.constant 96 : i32
    %14 = vector.broadcast %c96_i32 : i32 to vector<1x128xi32>
    %15 = arith.cmpi slt, %13, %14 : vector<1x128xi32>
    %cst_10 = arith.constant 5.000000e-01 : f32
    %cst_11 = arith.constant 1.000000e+00 : f32
    %16 = vector.broadcast %cst_10 : f32 to vector<1x128xf32>
    %17 = vector.broadcast %cst_11 : f32 to vector<1x128xf32>
    %18 = arith.select %15, %16, %17 : vector<1x128xi1>, vector<1x128xf32>
    %19 = vector.broadcast %18 : vector<1x128xf32> to vector<8x128xf32>
    %20 = arith.mulf %12, %19 : vector<8x128xf32>
    %cst_12 = arith.constant 5.000000e-01 : f32
    %cst_13 = arith.constant 0.000000e+00 : f32
    %21 = vector.broadcast %cst_12 : f32 to vector<1x128xf32>
    %22 = vector.broadcast %cst_13 : f32 to vector<1x128xf32>
    %23 = arith.select %15, %21, %22 : vector<1x128xi1>, vector<1x128xf32>
    %24 = vector.broadcast %23 : vector<1x128xf32> to vector<8x128xf32>
    %25 = arith.addf %20, %24 : vector<8x128xf32>
    %26 = vector.extract_strided_slice %25 {offsets = [0, 0], sizes = [8, 32], strides = [1, 1]} : vector<8x128xf32> to vector<8x32xf32>
    %27 = vector.extract_strided_slice %25 {offsets = [0, 32], sizes = [8, 32], strides = [1, 1]} : vector<8x128xf32> to vector<8x32xf32>
    %28 = vector.extract_strided_slice %25 {offsets = [0, 64], sizes = [8, 32], strides = [1, 1]} : vector<8x128xf32> to vector<8x32xf32>
    %29 = vector.extract_strided_slice %25 {offsets = [0, 96], sizes = [8, 32], strides = [1, 1]} : vector<8x128xf32> to vector<8x32xf32>
    %c0_14 = arith.constant 0 : index
    %c0_15 = arith.constant 0 : index
    %30 = vector.load %arg3[%c0_14, %c0_15] : memref<8x32xf32, #tpu.memory_space<vmem>>, vector<8x32xf32>
    %31 = arith.mulf %27, %30 : vector<8x32xf32>
    %32 = arith.mulf %26, %29 : vector<8x32xf32>
    %33 = arith.addf %31, %32 : vector<8x32xf32>
    %34 = math.tanh %33 : vector<8x32xf32>
    %35 = arith.mulf %28, %34 : vector<8x32xf32>
    %36 = arith.truncf %35 : vector<8x32xf32> to vector<8x32xbf16>
    %c0_16 = arith.constant 0 : index
    %c0_17 = arith.constant 0 : index
    %37 = vector.load %arg7[%c0_16, %c0_17] : memref<8x32xbf16, #tpu.memory_space<vmem>>, vector<8x32xbf16>
    tpu.vector_store %arg7[%c0_16, %c0_17], %36 {strides = array<i32>} : memref<8x32xbf16, #tpu.memory_space<vmem>>, vector<8x32xbf16>,
    %c0_18 = arith.constant 0 : index
    %c0_19 = arith.constant 0 : index
    %38 = vector.load %arg8[%c0_18, %c0_19] : memref<8x32xf32, #tpu.memory_space<vmem>>, vector<8x32xf32>
    tpu.vector_store %arg8[%c0_18, %c0_19], %33 {strides = array<i32>} : memref<8x32xf32, #tpu.memory_space<vmem>>, vector<8x32xf32>,
    return
  }
  func.func @transform_0(%arg0: i32) -> (i32, i32) {
    %c0_i32 = arith.constant 0 : i32
    %c0_i32_0 = arith.constant 0 : i32
    return %arg0, %c0_i32 : i32, i32
  }
  func.func @transform_1(%arg0: i32) -> (i32, i32) {
    %c0_i32 = arith.constant 0 : i32
    %c0_i32_0 = arith.constant 0 : i32
    return %arg0, %c0_i32 : i32, i32
  }
  func.func @transform_2(%arg0: i32) -> (i32, i32) {
    %c0_i32 = arith.constant 0 : i32
    %c0_i32_0 = arith.constant 0 : i32
    return %arg0, %c0_i32 : i32, i32
  }
  func.func @transform_3(%arg0: i32) -> (i32, i32) {
    %c0_i32 = arith.constant 0 : i32
    %c0_i32_0 = arith.constant 0 : i32
    %c0_i32_1 = arith.constant 0 : i32
    return %c0_i32, %c0_i32_0 : i32, i32
  }
  func.func @transform_4(%arg0: i32) -> (i32, i32) {
    %c0_i32 = arith.constant 0 : i32
    %c0_i32_0 = arith.constant 0 : i32
    %c0_i32_1 = arith.constant 0 : i32
    return %c0_i32, %c0_i32_0 : i32, i32
  }
  func.func @transform_5(%arg0: i32) -> (i32, i32) {
    %c0_i32 = arith.constant 0 : i32
    %c0_i32_0 = arith.constant 0 : i32
    %c0_i32_1 = arith.constant 0 : i32
    return %c0_i32, %c0_i32_0 : i32, i32
  }
  func.func @transform_6(%arg0: i32) -> (i32, i32) {
    %c0_i32 = arith.constant 0 : i32
    %c0_i32_0 = arith.constant 0 : i32
    return %arg0, %c0_i32 : i32, i32
  }
  func.func @transform_7(%arg0: i32) -> (i32, i32) {
    %c0_i32 = arith.constant 0 : i32
    %c0_i32_0 = arith.constant 0 : i32
    return %arg0, %c0_i32 : i32, i32
  }
}

</mosaic_0001>

<llo_original>
// kernel: vanilla_lstm_cell.1
$region0: #{vanilla_lstm_cell.1}
  #allocation0 [shape = 'u32[]', space=smem, size = 0x4, offset = 0x4, fixed_abs, tag = 'smem constant byte address 0x4 - core index']
  #allocation1 [shape = 'u32[144,128]{1,0:T(1,128)}', space=vmem, size = 0x12000, scoped, tag = 'internal scratch']
  %s0 = inlined_call_operand.hbm [shape: f32[8,16], index: 0, kind: input, shape index: {}]
  %s1 = inlined_call_operand.hbm [shape: f32[8,32], index: 1, kind: input, shape index: {}]
  %s2 = inlined_call_operand.hbm [shape: f32[8,32], index: 2, kind: input, shape index: {}]
  %s3 = inlined_call_operand.vmem [shape: bf16[16,128], index: 3, kind: input, shape index: {}]
  %s4 = inlined_call_operand.hbm [shape: bf16[32,128], index: 4, kind: input, shape index: {}]
  %s5 = inlined_call_operand.vmem [shape: f32[1,128], index: 5, kind: input, shape index: {}]
  %s6 = inlined_call_operand.vmem [shape: bf16[8,32], index: 6, kind: output, shape index: {0}]
  %s7 = inlined_call_operand.hbm [shape: f32[8,32], index: 7, kind: output, shape index: {1}]
  %8 = xla_tuple %s6, %s7
  %s9 = sld [smem:[#allocation0]]
  $region58: #{vanilla_lstm_cell.1} parent=0
    _
  %s11 = ssub.s32 1, %s9
  %s12 = scalar_select 0, %s11, %s9
  $region1: #{vanilla_lstm_cell.1} parent=0
    #allocation2 [shape = 'u8[4096]{0}', space=vmem, size = 0x1000, scoped, tag = 'input window, operand 0, single buffered']
    #allocation3 [shape = 's32[1]{0}', space=sflag, size = 0x4, scoped, tag = 'scoped memory for vanilla_lstm_cell.1']
    #allocation4 [shape = 's32[1]{0}', space=sflag, size = 0x4, scoped, tag = 'scoped memory for vanilla_lstm_cell.1']
    #allocation5 [shape = 'u8[4096]{0}', space=vmem, size = 0x1000, scoped, tag = 'input window, operand 1, single buffered']
    #allocation6 [shape = 's32[1]{0}', space=sflag, size = 0x4, scoped, tag = 'scoped memory for vanilla_lstm_cell.1']
    #allocation7 [shape = 'u8[4096]{0}', space=vmem, size = 0x1000, scoped, tag = 'input window, operand 2, single buffered']
    #allocation8 [shape = 'u8[8192]{0}', space=vmem, size = 0x2000, scoped, tag = 'input window, operand 4, single buffered']
    #allocation9 [shape = 's32[1]{0}', space=sflag, size = 0x4, scoped, tag = 'scoped memory for vanilla_lstm_cell.1']
    #allocation10 [shape = 'u8[4096]{0}', space=vmem, size = 0x1000, scoped, tag = 'output window, operand 1, single buffered']
    %13 = vsyncpa [#allocation3], 0
    %14 = vsyncpa [#allocation6], 0
    %15 = vsyncpa [#allocation9], 0
    %16 = vsyncpa [#allocation4], 0
    // Predicated region
    $region2: #{vanilla_lstm_cell.1} parent=1 // pred_check
      _
    $region3: #{vanilla_lstm_cell.1} parent=1 // pred_check_branch
      %18 = sbr.rel (0) target = $region5
    $region4: #{vanilla_lstm_cell.1} parent=1 // pred_region
      %s20 = ssub.s32 128, 128
      %21 = vsyncadd [#allocation3], %s20
      %s23 = sshll.u32 [#allocation2], 4
      %s24 = int_to_ptr.vmem [resolvable:$true] %s23
      %26 = dma.hbm_to_vmem [thread:$0]  %s0, 128, %s24, [#allocation3]
    $region5: #{vanilla_lstm_cell.1} parent=1 // pred_fallthru
      _
    // Predicated region
    $region6: #{vanilla_lstm_cell.1} parent=1 // pred_check
      _
    $region7: #{vanilla_lstm_cell.1} parent=1 // pred_check_branch
      %28 = sbr.rel (0) target = $region9
    $region8: #{vanilla_lstm_cell.1} parent=1 // pred_region
      %s30 = ssub.s32 128, 128
      %31 = vsyncadd [#allocation6], %s30
      %s33 = sshll.u32 [#allocation5], 4
      %s34 = int_to_ptr.vmem [resolvable:$true] %s33
      %36 = dma.hbm_to_vmem [thread:$0]  %s1, 128, %s34, [#allocation6]
    $region9: #{vanilla_lstm_cell.1} parent=1 // pred_fallthru
      _
    // Predicated region
    $region10: #{vanilla_lstm_cell.1} parent=1 // pred_check
      _
    $region11: #{vanilla_lstm_cell.1} parent=1 // pred_check_branch
      %38 = sbr.rel (0) target = $region13
    $region12: #{vanilla_lstm_cell.1} parent=1 // pred_region
      %s40 = ssub.s32 128, 128
      %41 = vsyncadd [#allocation6], %s40
      %s43 = sshll.u32 [#allocation7], 4
      %s44 = int_to_ptr.vmem [resolvable:$true] %s43
      %46 = dma.hbm_to_vmem [thread:$0]  %s2, 128, %s44, [#allocation6]
    $region13: #{vanilla_lstm_cell.1} parent=1 // pred_fallthru
      _
    // Predicated region
    $region14: #{vanilla_lstm_cell.1} parent=1 // pred_check
      _
    $region15: #{vanilla_lstm_cell.1} parent=1 // pred_check_branch
      %48 = sbr.rel (0) target = $region17
    $region16: #{vanilla_lstm_cell.1} parent=1 // pred_region
      _
    $region17: #{vanilla_lstm_cell.1} parent=1 // pred_fallthru
      _
    // Predicated region
    $region18: #{vanilla_lstm_cell.1} parent=1 // pred_check
      _
    $region19: #{vanilla_lstm_cell.1} parent=1 // pred_check_branch
      %50 = sbr.rel (0) target = $region21
    $region20: #{vanilla_lstm_cell.1} parent=1 // pred_region
      %s52 = ssub.s32 256, 256
      %53 = vsyncadd [#allocation9], %s52
      %s54 = sshll.u32 [#allocation8], 4
      %s55 = int_to_ptr.vmem [resolvable:$true] %s54
      %60 = dma.hbm_to_vmem [thread:$0]  %s4, 256, %s55, [#allocation9], 64, 64, 4
    $region21: #{vanilla_lstm_cell.1} parent=1 // pred_fallthru
      _
    // Predicated region
    $region22: #{vanilla_lstm_cell.1} parent=1 // pred_check
      _
    $region23: #{vanilla_lstm_cell.1} parent=1 // pred_check_branch
      %62 = sbr.rel (0) target = $region25
    $region24: #{vanilla_lstm_cell.1} parent=1 // pred_region
      _
    $region25: #{vanilla_lstm_cell.1} parent=1 // pred_fallthru
      _
    // Predicated region
    $region26: #{vanilla_lstm_cell.1} parent=1 // pred_check
      _
    $region27: #{vanilla_lstm_cell.1} parent=1 // pred_check_branch
      %64 = sbr.rel (0) target = $region29
    $region28: #{vanilla_lstm_cell.1} parent=1 // pred_region
      %65 = dma.done [#allocation3], 128
    $region29: #{vanilla_lstm_cell.1} parent=1 // pred_fallthru
      _
    // Predicated region
    $region30: #{vanilla_lstm_cell.1} parent=1 // pred_check
      _
    $region31: #{vanilla_lstm_cell.1} parent=1 // pred_check_branch
      %67 = sbr.rel (0) target = $region33
    $region32: #{vanilla_lstm_cell.1} parent=1 // pred_region
      %68 = dma.done [#allocation6], 128
    $region33: #{vanilla_lstm_cell.1} parent=1 // pred_fallthru
      _
    // Predicated region
    $region34: #{vanilla_lstm_cell.1} parent=1 // pred_check
      _
    $region35: #{vanilla_lstm_cell.1} parent=1 // pred_check_branch
      %70 = sbr.rel (0) target = $region37
    $region36: #{vanilla_lstm_cell.1} parent=1 // pred_region
      %71 = dma.done [#allocation6], 128
    $region37: #{vanilla_lstm_cell.1} parent=1 // pred_fallthru
      _
    // Predicated region
    $region38: #{vanilla_lstm_cell.1} parent=1 // pred_check
      _
    $region39: #{vanilla_lstm_cell.1} parent=1 // pred_check_branch
      %73 = sbr.rel (0) target = $region41
    $region40: #{vanilla_lstm_cell.1} parent=1 // pred_region
      %74 = dma.done [#allocation9], 256
    $region41: #{vanilla_lstm_cell.1} parent=1 // pred_fallthru
      _
    %v76 = vld [vmem:[#allocation2] sm:$0xff]
    %v77 = vpack.c.bf16 %v76, %v76
    %v78 = vld [vmem:[#allocation5] sm:$0xff]
    %v79 = vpack.c.bf16 %v78, %v78
    %v80 = vld [vmem:[%s3] sm:$0xf]
    %v81 = vld [vmem:[%s3 + $0x4] sm:$0xf]
    %v82 = vld [vmem:[#allocation8] sm:$0xf]
    %v83 = vld [vmem:[#allocation8 + $0x4] sm:$0xf]
    %v84 = vld [vmem:[#allocation8 + $0x8] sm:$0xf]
    %v85 = vld [vmem:[#allocation8 + $0xc] sm:$0xf]
    %v90 = vunpack.c.l.b16 %v82
    %v91 = vunpack.c.l.b16 %v83
    %v92 = vunpack.c.l.b16 %v84
    %v93 = vunpack.c.l.b16 %v85
    %v94 = vpack.c.b16 %v91, %v90
    %v95 = vpack.c.b16 %v93, %v92
    %vm98 = vcmask 261120
    %v100 = vsel %vm98, %v79, 0
    %102 = vmatprep.subr.bf16.mxu0 0
    %103 = vmatpush1.bf16.msra.mxu0 %v94
    %104 = vmatprep.subr.bf16.mxu0 0
    %105 = vmatpush1.bf16.msra.mxu0 %v95
    %106 = vmatprep.subr.bf16.mxu0 0
    %107 = vmatpush1.bf16.msra.mxu0 0
    %108 = vmatprep.subr.bf16.mxu0 0
    %109 = vmatpush1.bf16.msra.mxu0 0
    %110 = vmatprep.subr.bf16.mxu0 0
    %111 = vmatpush1.bf16.msra.mxu0 0
    %112 = vmatprep.subr.bf16.mxu0 0
    %113 = vmatpush1.bf16.msra.mxu0 0
    %114 = vmatprep.subr.bf16.mxu0 0
    %115 = vmatpush1.bf16.msra.mxu0 0
    %116 = vmatprep.subr.bf16.mxu0 0
    %117 = vmatpush1.bf16.msra.mxu0 0
    %118 = vmatprep.subr.bf16.mxu0 0
    %119 = vmatpush1.bf16.msra.mxu0 0
    %120 = vmatprep.subr.bf16.mxu0 0
    %121 = vmatpush1.bf16.msra.mxu0 0
    %122 = vmatprep.subr.bf16.mxu0 0
    %123 = vmatpush1.bf16.msra.mxu0 0
    %124 = vmatprep.subr.bf16.mxu0 0
    %125 = vmatpush1.bf16.msra.mxu0 0
    %126 = vmatprep.subr.bf16.mxu0 0
    %127 = vmatpush1.bf16.msra.mxu0 0
    %128 = vmatprep.subr.bf16.mxu0 0
    %129 = vmatpush1.bf16.msra.mxu0 0
    %130 = vmatprep.subr.bf16.mxu0 0
    %131 = vmatpush1.bf16.msra.mxu0 0
    %132 = vmatprep.subr.bf16.mxu0 0
    %133 = vmatpush1.bf16.msra.mxu0 0
    %134 = vmatprep.mubr.bf16.mxu0 0
    %135 = vmatmul.mubr.bf16.gmra.mrb[0].mxu0 %v100
    %v136 = vpop.f32.mrb[0].mxu0
    %v137 = vadd.f32 0.0, %v136
    %v138 = vpop.f32.mrb[0].mxu0
    %v139 = vpop.f32.mrb[0].mxu0
    %v140 = vpop.f32.mrb[0].mxu0
    %141 = vdwg.mxu0
    %v144 = vunpack.c.l.b16 %v80
    %v145 = vunpack.c.l.b16 %v81
    %v146 = vpack.c.b16 %v145, %v144
    %vm148 = vcmask 130048
    %v150 = vsel %vm148, %v77, 0
    %152 = vmatprep.subr.bf16.mxu0 0
    %153 = vmatpush1.bf16.msra.mxu0 %v146
    %154 = vmatprep.subr.bf16.mxu0 0
    %155 = vmatpush1.bf16.msra.mxu0 0
    %156 = vmatprep.subr.bf16.mxu0 0
    %157 = vmatpush1.bf16.msra.mxu0 0
    %158 = vmatprep.subr.bf16.mxu0 0
    %159 = vmatpush1.bf16.msra.mxu0 0
    %160 = vmatprep.subr.bf16.mxu0 0
    %161 = vmatpush1.bf16.msra.mxu0 0
    %162 = vmatprep.subr.bf16.mxu0 0
    %163 = vmatpush1.bf16.msra.mxu0 0
    %164 = vmatprep.subr.bf16.mxu0 0
    %165 = vmatpush1.bf16.msra.mxu0 0
    %166 = vmatprep.subr.bf16.mxu0 0
    %167 = vmatpush1.bf16.msra.mxu0 0
    %168 = vmatprep.subr.bf16.mxu0 0
    %169 = vmatpush1.bf16.msra.mxu0 0
    %170 = vmatprep.subr.bf16.mxu0 0
    %171 = vmatpush1.bf16.msra.mxu0 0
    %172 = vmatprep.subr.bf16.mxu0 0
    %173 = vmatpush1.bf16.msra.mxu0 0
    %174 = vmatprep.subr.bf16.mxu0 0
    %175 = vmatpush1.bf16.msra.mxu0 0
    %176 = vmatprep.subr.bf16.mxu0 0
    %177 = vmatpush1.bf16.msra.mxu0 0
    %178 = vmatprep.subr.bf16.mxu0 0
    %179 = vmatpush1.bf16.msra.mxu0 0
    %180 = vmatprep.subr.bf16.mxu0 0
    %181 = vmatpush1.bf16.msra.mxu0 0
    %182 = vmatprep.subr.bf16.mxu0 0
    %183 = vmatpush1.bf16.msra.mxu0 0
    %184 = vmatprep.mubr.bf16.mxu0 0
    %185 = vmatmul.mubr.bf16.gmra.mrb[0].mxu0 %v150
    %v186 = vpop.f32.mrb[0].mxu0
    %v187 = vadd.f32 %v137, %v186
    %v188 = vpop.f32.mrb[0].mxu0
    %v189 = vpop.f32.mrb[0].mxu0
    %v190 = vpop.f32.mrb[0].mxu0
    %191 = vdwg.mxu0
    %v192 = vld [vmem:[%s5] sm:$0x1]
    %v194 = vlaneseq
    %v195 = vshrl.u32 %v194, 7
    %v196 = vsub.s32 0, %v195
    %v197 = vrot.slane %v192, %v196
    %v199 = vadd.f32 %v187, %v197
    %v200 = vtanh.pop %v199
    %v201 = vlaneseq
    %v202 = vand.u32 %v201, 127
    %vm203 = vcmp.lt.s32.totalorder %v202, 96
    %v204 = vsel %vm203, 0.5, 1.0
    %v205 = vmul.f32 %v200, %v204
    %v206 = vsel %vm203, 0.5, 0.0
    %v207 = vadd.f32 %v205, %v206
    %v208 = vld [vmem:[#allocation7] sm:$0xff]
    %210 = vrot.lane.b32.xlu0 %v208, 32
    %v211 = vpop.permute.xlu0 %210
    %v213 = vmul.f32 %v207, %v211
    %215 = vrot.lane.b32.xlu0 %v207, 32
    %v216 = vpop.permute.xlu0 %215
    %v218 = vmul.f32 %v207, %v216
    %220 = vrot.lane.b32.xlu0 %v218, 32
    %v221 = vpop.permute.xlu0 %220
    %v223 = vadd.f32 %v213, %v221
    %v224 = vtanh.pop %v223
    %226 = vrot.lane.b32.xlu0 %v224, 32
    %v227 = vpop.permute.xlu0 %226
    %v229 = vmul.f32 %v207, %v227
    %v230 = vpack.c.bf16 %v229, %v229
    %v232 = vunpack.c.l.b16 %v230
    %v233 = vpack.c.b16 %v232, %v232
    %234 = vrot.lane.b32.xlu0 %v233, 64
    %v235 = vpop.permute.xlu0 %234
    %vm237 = vcmask 257024
    %238 = vst.msk [vmem:[%s6] sm:$0xf] %vm237, %v235
    %240 = vrot.lane.b32.xlu0 %v223, 96
    %v241 = vpop.permute.xlu0 %240
    %243 = vst.msk [vmem:[#allocation10] sm:$0xff] %vm98, %v241
    // Predicated region
    $region42: #{vanilla_lstm_cell.1} parent=1 // pred_check
      _
    $region43: #{vanilla_lstm_cell.1} parent=1 // pred_check_branch
      %245 = sbr.rel (0) target = $region45
    $region44: #{vanilla_lstm_cell.1} parent=1 // pred_region
      _
    $region45: #{vanilla_lstm_cell.1} parent=1 // pred_fallthru
      _
    // Predicated region
    $region46: #{vanilla_lstm_cell.1} parent=1 // pred_check
      _
    $region47: #{vanilla_lstm_cell.1} parent=1 // pred_check_branch
      %247 = sbr.rel (0) target = $region49
    $region48: #{vanilla_lstm_cell.1} parent=1 // pred_region
      %s249 = ssub.s32 128, 128
      %250 = vsyncadd [#allocation4], %s249
      %s252 = sshll.u32 [#allocation10], 4
      %s253 = int_to_ptr.vmem [resolvable:$true] %s252
      %255 = dma.vmem_to_hbm [thread:$0]  %s253, 128, %s7, [#allocation4]
    $region49: #{vanilla_lstm_cell.1} parent=1 // pred_fallthru
      _
    // Predicated region
    $region50: #{vanilla_lstm_cell.1} parent=1 // pred_check
      _
    $region51: #{vanilla_lstm_cell.1} parent=1 // pred_check_branch
      %257 = sbr.rel (0) target = $region53
    $region52: #{vanilla_lstm_cell.1} parent=1 // pred_region
      _
    $region53: #{vanilla_lstm_cell.1} parent=1 // pred_fallthru
      _
    // Predicated region
    $region54: #{vanilla_lstm_cell.1} parent=1 // pred_check
      _
    $region55: #{vanilla_lstm_cell.1} parent=1 // pred_check_branch
      %259 = sbr.rel (0) target = $region57
    $region56: #{vanilla_lstm_cell.1} parent=1 // pred_region
      %260 = dma.done [#allocation4], 128
    $region57: #{vanilla_lstm_cell.1} parent=1 // pred_fallthru
      _
    %261 = vsyncpa [#allocation3], 1
    %262 = vsyncpa [#allocation6], 1
    %263 = vsyncpa [#allocation9], 1
    %264 = vsyncpa [#allocation4], 1

</llo_original>
